<compile_context>
chip_gen: v5e
topology: v5e:2x2
jax: 0.10.0
libtpu: 0.0.40
codegen_flags: <defaults>
</compile_context>

<pallas_src>
import functools

import jax
import jax.numpy as jnp
from jax import lax
from jax.experimental import pallas as pl
from jax.experimental.pallas import tpu as pltpu

PATCH = 7
PAD = PATCH // 2          # 3
LANE = 128                # TPU vreg lane width
NCH = PATCH * PATCH       # 49 census channels
BAND_ROWS = 128           # max output rows per band (VMEM budget, all gens)


def _round_up(x, m):
    return (x + m - 1) // m * m


def _pick_band_rows(H, max_rows=BAND_ROWS):
    """Output rows per band: whole frame if small, else an 8-aligned divisor of
    H in (max_rows/2, max_rows]; otherwise max_rows with bottom zero padding."""
    if H <= max_rows:
        return H
    for tb in range(max_rows, max_rows // 2, -1):
        if tb % 8 == 0 and H % tb == 0:
            return tb
    return max_rows


@functools.lru_cache(maxsize=None)
def _roll_is_forward():
    """Resolve pltpu.roll's shift convention once per process (cached).

    Returns True when pltpu.roll(x, s, axis) == jnp.roll(x, s, axis) (shift
    toward higher indices).  Hard-fails if neither convention matches: the
    slice+concat fallback (98 lane-unaligned copies per frame pair) is never
    taken silently.
    """
    def kernel(x_ref, o_ref):
        o_ref[...] = pltpu.roll(x_ref[...], 1, 1)

    x = jnp.broadcast_to(jnp.arange(LANE, dtype=jnp.float32), (8, LANE))
    y = pl.pallas_call(
        kernel, out_shape=jax.ShapeDtypeStruct((8, LANE), jnp.float32))(x)
    if bool(jnp.array_equal(y, jnp.roll(x, 1, axis=1))):
        return True
    if bool(jnp.array_equal(y, jnp.roll(x, -1, axis=1))):
        return False
    raise RuntimeError("pltpu.roll: could not determine its shift convention")


def _census_band_kernel(g0_ref, g1_ref, out_ref, acc_ref, *,
                        tb, H, W, Wa, emit_map, roll_fwd):
    """Census loss for one (batch, row-band) grid step.

    g0_ref/g1_ref : (tb + 6, Wa) zero-padded grayscale band (3 halo rows
                    top/bottom, 3 halo cols left, lane padding right).
    out_ref       : (tb, Wa)  masked per-pixel loss band       (emit_map=True)
                    (1, LANE) partial sum stored in lane 0     (mean path)
    acc_ref       : (tb, Wa) f32 VMEM scratch: sum over channels of 1/(0.1+d).
    """
    band = pl.program_id(1)

    def shift_cols(s, dx):
        # out[:, j] = s[:, j + dx]; wrapped columns land only at j >= Wa - dx
        # >= W (lane-padding region), which no store / reduction ever uses.
        if dx == 0:
            return s
        shift = (Wa - dx) if roll_fwd else dx
        return pltpu.roll(s, shift, 1)

    # Center value gp[i+3, j+3] over the (tb, Wa) band (loop-invariant).
    # TODO(synk): if the Mosaic dump shows these sublane-offset slab slices
    # lowering to full-slab copies, switch the dy shift to a sublane
    # pltpu.roll of the aligned slab (XLU has slack).
    c0 = shift_cols(g0_ref[pl.ds(PAD, tb), :], PAD)
    c1 = shift_cols(g1_ref[pl.ds(PAD, tb), :], PAD)

    acc_ref[...] = jnp.zeros_like(acc_ref)

    # dy as a real in-kernel loop (bounds live ranges to one dy iteration);
    # the 7 dx shifts stay statically unrolled inside.
    @pl.loop(0, PATCH)
    def _(dy):
        s0 = g0_ref[pl.ds(dy, tb), :]          # rows i+dy of frame 0
        s1 = g1_ref[pl.ds(dy, tb), :]          # rows i+dy of frame 1
        acc = acc_ref[...]
        for dx in range(PATCH):
            p0 = shift_cols(s0, dx)            # gp0[i+dy, j+dx]
            p1 = shift_cols(s1, dx)
            # census transform: t / sqrt(0.81 + t^2) == t * rsqrt(0.81 + t^2)
            t0 = p0 - c0
            t0 = t0 * lax.rsqrt(0.81 + t0 * t0)
            t1 = p1 - c1
            t1 = t1 * lax.rsqrt(0.81 + t1 * t1)
            # soft hamming: d/(0.1+d) = 1 - 0.1*r with r = 1/(0.1+d).
            # EUP approx reciprocal + one Newton step (kept: ~f32 accuracy so
            # the 1e-5 per-pixel tolerance holds; raw vrcp ~2^-12 is too coarse).
            d = t0 - t1
            d = d * d
            y = 0.1 + d
            r = pl.reciprocal(y, approx=True)
            r = r * (2.0 - y * r)
            acc = acc + r
        acc_ref[...] = acc

    # mean over 49 channels of (1 - 0.1*r)  ==  1 - 0.1/49 * sum(r)
    dist = 1.0 - (0.1 / NCH) * acc_ref[...]

    # valid_mask(padding=1) plus row/lane zero padding, in global row coords.
    row = band * tb + lax.broadcasted_iota(jnp.int32, (tb, Wa), 0)
    col = lax.broadcasted_iota(jnp.int32, (tb, Wa), 1)
    valid = (row >= 1) & (row <= H - 2) & (col >= 1) & (col <= W - 2)

    if emit_map:
        # Lane-dense store (Wa multiple of 128); cropped to (H, W) in wrapper.
        out_ref[...] = jnp.where(valid, dist, 0.0)
    else:
        # Masked full-tile reduce (no row/lane-unaligned slicing), one partial
        # sum per (batch, band) -> no cross-step state, both axes "parallel".
        psum = jnp.sum(jnp.where(valid, dist, 0.0))
        lane = lax.broadcasted_iota(jnp.int32, (1, LANE), 1)
        out_ref[...] = jnp.where(lane == 0, psum, 0.0)


def _rgb2gray(img):
    # (N, 3, H, W) -> (N, H, W)
    return 0.2989 * img[:, 0] + 0.587 * img[:, 1] + 0.114 * img[:, 2]


def ternary_loss(img0, img1, reduce="mean"):
    """Pallas implementation of Ternary.forward."""
    N, C, H, W = img0.shape
    assert C == 3 and img1.shape == img0.shape

    # Lane-dense padded width (>= W + 6, multiple of 128).  NOTE: wall time
    # scales with Wa, so very narrow frames waste lanes.
    # TODO(synk): pack multiple narrow frames side-by-side along lanes if
    # small crops (W << 128) become a hot path.
    Wa = _round_up(W + 2 * PAD, LANE)
    tb = _pick_band_rows(H)                 # output rows per band
    nb = (H + tb - 1) // tb                 # number of row bands
    Hb = nb * tb                            # row extent incl. bottom padding
    tbh = tb + 2 * PAD                      # band rows incl. 3+3 halo

    def prep(img):
        g = _rgb2gray(img.astype(jnp.float32))
        gp = jnp.pad(g, ((0, 0), (PAD, Hb - H + PAD), (PAD, Wa - W - PAD)))
        # Overlapping row bands (6 halo rows duplicated host-side) so the
        # kernel keeps plain BlockSpec auto-pipelining: (N, nb, tb+6, Wa).
        return jnp.stack([gp[:, r * tb:r * tb + tbh, :] for r in range(nb)],
                         axis=1)

    b0, b1 = prep(img0), prep(img1)

    emit_map = (reduce != "mean")
    kernel = functools.partial(
        _census_band_kernel, tb=tb, H=H, W=W, Wa=Wa, emit_map=emit_map,
        roll_fwd=_roll_is_forward())

    if emit_map:
        out_shape = jax.ShapeDtypeStruct((N, 1, Hb, Wa), jnp.float32)
        out_spec = pl.BlockSpec((None, None, tb, Wa), lambda b, r: (b, 0, r, 0))
    else:
        out_shape = jax.ShapeDtypeStruct((N, nb, 1, LANE), jnp.float32)
        out_spec = pl.BlockSpec((None, None, 1, LANE), lambda b, r: (b, r, 0, 0))

    in_spec = pl.BlockSpec((None, None, tbh, Wa), lambda b, r: (b, r, 0, 0))

    out = pl.pallas_call(
        kernel,
        out_shape=out_shape,
        grid_spec=pltpu.PrefetchScalarGridSpec(
            num_scalar_prefetch=0,
            grid=(N, nb),
            in_specs=[in_spec, in_spec],
            out_specs=out_spec,
            scratch_shapes=[pltpu.VMEM((tb, Wa), jnp.float32)]),
        compiler_params=pltpu.CompilerParams(
            # Per-(batch, band) partial results -> no cross-step state ->
            # both grid axes shardable across TensorCores (megacore / v7x).
            dimension_semantics=("parallel", "parallel"),
            # Band working set at 1080p (Wa=2048, tb<=128) is ~15-20 MiB;
            # 48 MiB leaves headroom and stays below v7x's 64 MiB physical.
            vmem_limit_bytes=48 * 1024 * 1024),
    )(b0, b1)

    if emit_map:
        return out[:, :, :H, :W]
    # loss.mean() over the (N, 1, H, W) masked map.
    return jnp.sum(out) / (N * 1 * H * W)


def _ternary_ref(img0, img1):
    """Pure-JAX reference with the exact PyTorch-module math (sqrt + divides)."""
    N, _, H, W = img0.shape
    g0 = jnp.pad(_rgb2gray(img0.astype(jnp.float32)),
                 ((0, 0), (PAD, PAD), (PAD, PAD)))
    g1 = jnp.pad(_rgb2gray(img1.astype(jnp.float32)),
                 ((0, 0), (PAD, PAD), (PAD, PAD)))
    c0 = g0[:, PAD:PAD + H, PAD:PAD + W]
    c1 = g1[:, PAD:PAD + H, PAD:PAD + W]
    acc = jnp.zeros((N, H, W), jnp.float32)
    for dy in range(PATCH):
        for dx in range(PATCH):
            t0 = g0[:, dy:dy + H, dx:dx + W] - c0
            t0 = t0 / jnp.sqrt(0.81 + t0 * t0)
            t1 = g1[:, dy:dy + H, dx:dx + W] - c1
            t1 = t1 / jnp.sqrt(0.81 + t1 * t1)
            d = (t0 - t1) ** 2
            acc = acc + d / (0.1 + d)
    dist = acc / (PATCH * PATCH)
    mask = jnp.zeros((H, W), jnp.float32).at[1:H - 1, 1:W - 1].set(1.0)
    return (dist * mask[None])[:, None]


if __name__ == "__main__":
    key = jax.random.PRNGKey(0)
    k0, k1 = jax.random.split(key)
    img0 = jax.random.uniform(k0, (2, 3, 16, 16), dtype=jnp.float32)
    img1 = jax.random.uniform(k1, (2, 3, 16, 16), dtype=jnp.float32)

    loss_mean = ternary_loss(img0, img1)                  # reduce='mean' path
    loss_map = ternary_loss(img0, img1, reduce="none")    # per-pixel map path
    jax.block_until_ready((loss_mean, loss_map))

    ref_map = _ternary_ref(img0, img1)
    ref_mean = jnp.mean(ref_map)
    assert jnp.allclose(loss_mean, ref_mean, atol=1e-5, rtol=1e-4), (loss_mean, ref_mean)
    assert jnp.allclose(loss_map, ref_map, atol=1e-5, rtol=1e-4), "loss map mismatch"

    print("KERNEL_OK")
</pallas_src>

<mosaic_0001>
module attributes {stable_mosaic.version = 11 : i64} {
  func.func @kernel(%arg0: memref<8x128xf32, #tpu.memory_space<vmem>>, %arg1: memref<8x128xf32, #tpu.memory_space<vmem>>) attributes {dimension_semantics = [], scalar_prefetch = 0 : i64, scratch_operands = 0 : i64, tpu.core_type = #tpu.core_type<tc>} {
    %c0 = arith.constant 0 : index
    %c0_0 = arith.constant 0 : index
    %0 = vector.load %arg0[%c0, %c0_0] : memref<8x128xf32, #tpu.memory_space<vmem>>, vector<8x128xf32>
    %c1_i32 = arith.constant 1 : i32
    %1 = tpu.dynamic_rotate %0 by %c1_i32 dim 1 : vector<8x128xf32>, i32 -> vector<8x128xf32>
    %c0_1 = arith.constant 0 : index
    %c0_2 = arith.constant 0 : index
    %2 = vector.load %arg1[%c0_1, %c0_2] : memref<8x128xf32, #tpu.memory_space<vmem>>, vector<8x128xf32>
    tpu.vector_store %arg1[%c0_1, %c0_2], %1 {strides = array<i32>} : memref<8x128xf32, #tpu.memory_space<vmem>>, vector<8x128xf32>,
    return
  }
}

</mosaic_0001>

<llo_original>
// kernel: tpu_custom_call.1
$region0: #{tpu_custom_call.1}
  #allocation0 [shape = 'u32[]', space=smem, size = 0x4, offset = 0x4, fixed_abs, tag = 'smem constant byte address 0x4 - core index']
  #allocation1 [shape = 'u32[72,128]{1,0:T(1,128)}', space=vmem, size = 0x9000, scoped, tag = 'internal scratch']
  %s0 = inlined_call_operand.hbm [shape: f32[8,128], index: 0, kind: input, shape index: {}]
  %s1 = inlined_call_operand.hbm [shape: f32[8,128], index: 1, kind: output, shape index: {}]
  %s2 = sld [smem:[#allocation0]]
  $region18: #{tpu_custom_call.1} parent=0
    _
  %s4 = ssub.s32 1, %s2
  %s5 = scalar_select 0, %s4, %s2
  $region1: #{tpu_custom_call.1} parent=0
    #allocation2 [shape = 'u8[4096]{0}', space=vmem, size = 0x1000, scoped, tag = 'input window, operand 0, single buffered']
    #allocation3 [shape = 's32[1]{0}', space=sflag, size = 0x4, scoped, tag = 'scoped memory for tpu_custom_call.1']
    #allocation4 [shape = 's32[1]{0}', space=sflag, size = 0x4, scoped, tag = 'scoped memory for tpu_custom_call.1']
    #allocation5 [shape = 'u8[4096]{0}', space=vmem, size = 0x1000, scoped, tag = 'output window, operand 0, single buffered']
    %6 = vsyncpa [#allocation3], 0
    %7 = vsyncpa [#allocation4], 0
    // Predicated region
    $region2: #{tpu_custom_call.1} parent=1 // pred_check
      _
    $region3: #{tpu_custom_call.1} parent=1 // pred_check_branch
      %9 = sbr.rel (0) target = $region5
    $region4: #{tpu_custom_call.1} parent=1 // pred_region
      %11 = vsyncadd [#allocation3], 0
      %s13 = sshll.u32 %s0, 4
      %s14 = int_to_ptr.hbm [resolvable:$true] %s13
      %s15 = sshll.u32 [#allocation2], 4
      %s16 = int_to_ptr.vmem [resolvable:$true] %s15
      %18 = dma.hbm_to_vmem [thread:$0]  %s14, 128, %s16, [#allocation3]
    $region5: #{tpu_custom_call.1} parent=1 // pred_fallthru
      _
    // Predicated region
    $region6: #{tpu_custom_call.1} parent=1 // pred_check
      _
    $region7: #{tpu_custom_call.1} parent=1 // pred_check_branch
      %20 = sbr.rel (0) target = $region9
    $region8: #{tpu_custom_call.1} parent=1 // pred_region
      %22 = dma.done [#allocation3], 128
    $region9: #{tpu_custom_call.1} parent=1 // pred_fallthru
      _
    %v23 = vld [vmem:[#allocation2] sm:$0xff]
    %24 = vrot.lane.b32.xlu0 %v23, 1
    %v25 = vpop.permute.xlu0 %24
    %26 = vst [vmem:[#allocation5] sm:$0xff] %v25
    // Predicated region
    $region10: #{tpu_custom_call.1} parent=1 // pred_check
      _
    $region11: #{tpu_custom_call.1} parent=1 // pred_check_branch
      %28 = sbr.rel (0) target = $region13
    $region12: #{tpu_custom_call.1} parent=1 // pred_region
      %30 = vsyncadd [#allocation4], 0
      %s32 = sshll.u32 [#allocation5], 4
      %s33 = int_to_ptr.vmem [resolvable:$true] %s32
      %s34 = sshll.u32 %s1, 4
      %s35 = int_to_ptr.hbm [resolvable:$true] %s34
      %37 = dma.vmem_to_hbm [thread:$0]  %s33, 128, %s35, [#allocation4]
    $region13: #{tpu_custom_call.1} parent=1 // pred_fallthru
      _
    // Predicated region
    $region14: #{tpu_custom_call.1} parent=1 // pred_check
      _
    $region15: #{tpu_custom_call.1} parent=1 // pred_check_branch
      %39 = sbr.rel (0) target = $region17
    $region16: #{tpu_custom_call.1} parent=1 // pred_region
      %41 = dma.done [#allocation4], 128
    $region17: #{tpu_custom_call.1} parent=1 // pred_fallthru
      _
    %42 = vsyncpa [#allocation3], 1
    %43 = vsyncpa [#allocation4], 1

</llo_original>
